<compile_context>
chip_gen: v5e
topology: v5e:2x2
jax: 0.10.0
libtpu: 0.0.40
codegen_flags: <defaults>
</compile_context>

<pallas_src>
import functools

import jax
import jax.numpy as jnp
from jax.experimental import pallas as pl
from jax.experimental.pallas import tpu as pltpu


def _msa_kernel(x_ref, w_ref, b_ref, o_ref, *, n_heads, d_head, kv_chunk):
    """One batch element per grid step; all heads handled inside.

    x_ref : (1, N, d)      lane-dense input slab (d = n_heads * d_head)
    w_ref : (d, 3*d)       block-diagonal fused [Wq*scale | Wk | Wv]
    b_ref : (1, 3*d) f32   fused [bq*scale | bk | bv]
    o_ref : (1, N, d)      lane-dense output slab
    """
    in_dtype = x_ref.dtype
    d = n_heads * d_head
    x = x_ref[0]                                        # (N, d) single load
    N = x.shape[0]

    # Single full-width QKV projection (block-diagonal weights): one MXU push
    # with contraction K = d instead of n_heads pushes with K = d_head.
    qkv = jnp.dot(x, w_ref[...], preferred_element_type=jnp.float32)
    qkv = qkv + b_ref[...]                              # (N, 3*d) f32
    qkv = qkv.astype(in_dtype)                          # MXU operand dtype

    for h in range(n_heads):                            # static, small H
        c_q = h * d_head
        q = qkv[:, c_q:c_q + d_head]                    # already scaled
        k = qkv[:, d + c_q:d + c_q + d_head]
        v = qkv[:, 2 * d + c_q:2 * d + c_q + d_head]

        # KV-chunked online softmax: no (N, N) f32 tile resident for large N.
        m_i = jnp.full((N, 1), -jnp.inf, jnp.float32)
        l_i = jnp.zeros((N, 1), jnp.float32)
        acc = jnp.zeros((N, d_head), jnp.float32)
        for c0 in range(0, N, kv_chunk):
            c1 = min(c0 + kv_chunk, N)
            # q @ k_chunk^T in NT form (no XLU transpose), f32 accumulation.
            s = jax.lax.dot_general(
                q, k[c0:c1], (((1,), (1,)), ((), ())),
                preferred_element_type=jnp.float32)     # (N, chunk)
            m_new = jnp.maximum(m_i, jnp.max(s, axis=-1, keepdims=True))
            alpha = jnp.exp(m_i - m_new)
            p = jnp.exp(s - m_new)
            l_i = alpha * l_i + jnp.sum(p, axis=-1, keepdims=True)
            acc = alpha * acc + jnp.dot(p.astype(in_dtype), v[c0:c1],
                                        preferred_element_type=jnp.float32)
            m_i = m_new

        out_h = acc * pl.reciprocal(l_i, approx=True)   # EUP reciprocal
        # Store this head's lanes immediately (bounds live ranges); the HBM
        # writeback is still one lane-dense (1, N, d) slab per grid step.
        o_ref[0, :, c_q:c_q + d_head] = out_h.astype(o_ref.dtype)


def msa_forward(x, wq, bq, wk, bk, wv, bv, *, n_heads):
    """x: (B, N, d). Per-head weights W*: (n_heads, dh, dh), b*: (n_heads, dh).

    The linear is applied as seq @ W + b (W is the transpose of PyTorch's
    nn.Linear.weight). Returns (B, N, d), matching MSA.forward.
    """
    B, N, d = x.shape
    dh = d // n_heads
    scale = 1.0 / (dh ** 0.5)
    itemsize = jnp.dtype(x.dtype).itemsize

    # Fold the softmax scale into the Q projection, and pack all per-head
    # Q/K/V weights into one block-diagonal (d, 3*d) matrix so the kernel can
    # do a single full-contraction-width matmul per batch element.
    wq_s = (wq * scale).astype(x.dtype)
    w_bd = jnp.zeros((d, 3 * d), dtype=x.dtype)
    for h in range(n_heads):
        r0, r1 = h * dh, (h + 1) * dh
        w_bd = w_bd.at[r0:r1, r0:r1].set(wq_s[h])
        w_bd = w_bd.at[r0:r1, d + r0:d + r1].set(wk[h].astype(x.dtype))
        w_bd = w_bd.at[r0:r1, 2 * d + r0:2 * d + r1].set(wv[h].astype(x.dtype))
    b_bd = jnp.concatenate(
        [(bq * scale).reshape(-1), bk.reshape(-1), bv.reshape(-1)]
    ).astype(jnp.float32).reshape(1, 3 * d)

    # KV chunk: degenerate (single chunk) for small N, flash-style for large N.
    kv_chunk = N if N <= 1024 else 512

    x_spec = pl.BlockSpec((1, N, d), lambda b: (b, 0, 0))
    w_spec = pl.BlockSpec((d, 3 * d), lambda b: (0, 0))     # DMA'd once
    b_spec = pl.BlockSpec((1, 3 * d), lambda b: (0, 0))     # DMA'd once

    # Explicit scoped-VMEM budget (double-buffered blocks + temps), capped at
    # v7x's 64 MiB physical VMEM per TensorCore.
    block_bytes = N * d * itemsize
    w_bytes = d * 3 * d * itemsize
    b_bytes = 3 * d * 4
    qkv_bytes = N * 3 * d * (4 + itemsize)
    attn_tmp = N * kv_chunk * 4 * 2 + N * dh * 4 * 2 + N * 4 * 6
    vmem_est = 2 * (2 * block_bytes + w_bytes + b_bytes) + qkv_bytes + attn_tmp
    vmem_limit = int(min(max(2 * vmem_est, 4 * 2**20), 64 * 2**20))

    cost = pl.CostEstimate(
        flops=int(B * (2 * N * d * 3 * d + n_heads * 4 * N * N * dh)),
        transcendentals=int(B * n_heads * N * N),
        bytes_accessed=int(2 * B * N * d * itemsize + w_bytes + b_bytes),
    )

    return pl.pallas_call(
        functools.partial(_msa_kernel, n_heads=n_heads, d_head=dh,
                          kv_chunk=kv_chunk),
        out_shape=jax.ShapeDtypeStruct((B, N, d), x.dtype),
        grid_spec=pltpu.PrefetchScalarGridSpec(
            num_scalar_prefetch=0,
            grid=(B,),
            in_specs=[x_spec, w_spec, b_spec],
            out_specs=x_spec,
        ),
        compiler_params=pltpu.CompilerParams(
            dimension_semantics=("parallel",),
            vmem_limit_bytes=vmem_limit,
        ),
        cost_estimate=cost,
    )(x, w_bd, b_bd)


def msa_reference(x, wq, bq, wk, bk, wv, bv, *, n_heads):
    """Pure-JAX reference reproducing the PyTorch loop semantics."""
    B, N, d = x.shape
    dh = d // n_heads
    outs = []
    for b in range(B):
        heads = []
        for h in range(n_heads):
            seq = x[b, :, h * dh:(h + 1) * dh]
            q = seq @ wq[h] + bq[h]
            k = seq @ wk[h] + bk[h]
            v = seq @ wv[h] + bv[h]
            a = jax.nn.softmax(q @ k.T / (dh ** 0.5), axis=-1)
            heads.append(a @ v)
        outs.append(jnp.concatenate(heads, axis=-1))
    return jnp.stack(outs, axis=0)


if __name__ == "__main__":
    B, N, d, n_heads = 2, 8, 32, 2
    dh = d // n_heads

    key = jax.random.PRNGKey(0)
    kx, kq, kbq, kk, kbk, kv, kbv = jax.random.split(key, 7)

    x = jax.random.normal(kx, (B, N, d), dtype=jnp.float32)
    # deterministic synthetic parameter init (shapes from MSA.__init__)
    wq = jax.random.normal(kq, (n_heads, dh, dh), dtype=jnp.float32) * 0.1
    bq = jax.random.normal(kbq, (n_heads, dh), dtype=jnp.float32) * 0.1
    wk = jax.random.normal(kk, (n_heads, dh, dh), dtype=jnp.float32) * 0.1
    bk = jax.random.normal(kbk, (n_heads, dh), dtype=jnp.float32) * 0.1
    wv = jax.random.normal(kv, (n_heads, dh, dh), dtype=jnp.float32) * 0.1
    bv = jax.random.normal(kbv, (n_heads, dh), dtype=jnp.float32) * 0.1

    out = msa_forward(x, wq, bq, wk, bk, wv, bv, n_heads=n_heads)
    out = jax.block_until_ready(out)

    ref = msa_reference(x, wq, bq, wk, bk, wv, bv, n_heads=n_heads)
    assert out.shape == (B, N, d)
    # tolerance loosened slightly for the approx (EUP) reciprocal in softmax
    assert jnp.allclose(out, ref, atol=1e-3, rtol=1e-3), "mismatch vs reference"

    print("KERNEL_OK")
</pallas_src>

<mosaic_0001>
module attributes {stable_mosaic.version = 11 : i64} {
  func.func @_msa_kernel(%arg0: i32, %arg1: memref<1x8x32xf32, #tpu.memory_space<vmem>>, %arg2: memref<32x96xf32, #tpu.memory_space<vmem>>, %arg3: memref<1x96xf32, #tpu.memory_space<vmem>>, %arg4: memref<1x8x32xf32, #tpu.memory_space<vmem>>) attributes {dimension_semantics = [#tpu.dimension_semantics<parallel>], iteration_bounds = array<i64: 2>, scalar_prefetch = 0 : i64, scratch_operands = 0 : i64, tpu.core_type = #tpu.core_type<tc>, window_params = [{transform_indices = @transform_0, window_bounds = array<i64: 1, 8, 32>}, {pipeline_mode = #tpu.pipeline_mode<synchronous>, transform_indices = @transform_1, window_bounds = array<i64: 32, 96>}, {pipeline_mode = #tpu.pipeline_mode<synchronous>, transform_indices = @transform_2, window_bounds = array<i64: 1, 96>}, {transform_indices = @transform_3, window_bounds = array<i64: 1, 8, 32>}]} {
    %c0 = arith.constant 0 : index
    %c0_0 = arith.constant 0 : index
    %c0_1 = arith.constant 0 : index
    %0 = vector.load %arg1[%c0, %c0_0, %c0_1] : memref<1x8x32xf32, #tpu.memory_space<vmem>>, vector<1x8x32xf32>
    %1 = vector.shape_cast %0 : vector<1x8x32xf32> to vector<8x32xf32>
    %c0_2 = arith.constant 0 : index
    %c0_3 = arith.constant 0 : index
    %2 = vector.load %arg2[%c0_2, %c0_3] : memref<32x96xf32, #tpu.memory_space<vmem>>, vector<32x96xf32>
    %cst = arith.constant dense<0.000000e+00> : vector<8x96xf32>
    %3 = tpu.matmul %1, %2, %cst {dimension_numbers = #tpu.dot_dimension_numbers<[1], [0], [0], [1], [0, 0, 1, 1], [], []>} : vector<8x32xf32>, vector<32x96xf32>, vector<8x96xf32> -> vector<8x96xf32>
    %c0_4 = arith.constant 0 : index
    %c0_5 = arith.constant 0 : index
    %4 = vector.load %arg3[%c0_4, %c0_5] : memref<1x96xf32, #tpu.memory_space<vmem>>, vector<1x96xf32>
    %5 = vector.broadcast %4 : vector<1x96xf32> to vector<8x96xf32>
    %6 = arith.addf %3, %5 : vector<8x96xf32>
    %7 = vector.extract_strided_slice %6 {offsets = [0, 0], sizes = [8, 16], strides = [1, 1]} : vector<8x96xf32> to vector<8x16xf32>
    %8 = vector.extract_strided_slice %6 {offsets = [0, 32], sizes = [8, 16], strides = [1, 1]} : vector<8x96xf32> to vector<8x16xf32>
    %9 = vector.extract_strided_slice %6 {offsets = [0, 64], sizes = [8, 16], strides = [1, 1]} : vector<8x96xf32> to vector<8x16xf32>
    %cst_6 = arith.constant 0xFF800000 : f32
    %10 = vector.broadcast %cst_6 : f32 to vector<8x1xf32>
    %cst_7 = arith.constant 0.000000e+00 : f32
    %11 = vector.broadcast %cst_7 : f32 to vector<8x1xf32>
    %cst_8 = arith.constant 0.000000e+00 : f32
    %12 = vector.broadcast %cst_8 : f32 to vector<8x16xf32>
    %cst_9 = arith.constant dense<0.000000e+00> : vector<8x8xf32>
    %13 = tpu.matmul %7, %8, %cst_9 {dimension_numbers = #tpu.dot_dimension_numbers<[1], [1], [0], [0], [0, 0, 1, 0], [], []>} : vector<8x16xf32>, vector<8x16xf32>, vector<8x8xf32> -> vector<8x8xf32>
    %cst_10 = arith.constant dense<0xFF800000> : vector<8xf32>
    %14 = vector.multi_reduction <maximumf>, %13, %cst_10 [1] : vector<8x8xf32> to vector<8xf32>
    %15 = vector.shape_cast %14 : vector<8xf32> to vector<8x1xf32>
    %16 = arith.maximumf %10, %15 : vector<8x1xf32>
    %17 = arith.subf %10, %16 : vector<8x1xf32>
    %18 = math.exp %17 : vector<8x1xf32>
    %19 = vector.broadcast %16 : vector<8x1xf32> to vector<8x8xf32>
    %20 = arith.subf %13, %19 : vector<8x8xf32>
    %21 = math.exp %20 : vector<8x8xf32>
    %22 = arith.mulf %18, %11 : vector<8x1xf32>
    %cst_11 = arith.constant dense<0.000000e+00> : vector<8xf32>
    %23 = vector.multi_reduction <add>, %21, %cst_11 [1] : vector<8x8xf32> to vector<8xf32>
    %24 = vector.shape_cast %23 : vector<8xf32> to vector<8x1xf32>
    %25 = arith.addf %22, %24 : vector<8x1xf32>
    %26 = vector.broadcast %18 : vector<8x1xf32> to vector<8x16xf32>
    %27 = arith.mulf %26, %12 : vector<8x16xf32>
    %cst_12 = arith.constant dense<0.000000e+00> : vector<8x16xf32>
    %28 = tpu.matmul %21, %9, %cst_12 {dimension_numbers = #tpu.dot_dimension_numbers<[1], [0], [0], [1], [0, 0, 1, 1], [], []>} : vector<8x8xf32>, vector<8x16xf32>, vector<8x16xf32> -> vector<8x16xf32>
    %29 = arith.addf %27, %28 : vector<8x16xf32>
    %30 = tpu.reciprocal %25 {approx = true} : vector<8x1xf32> -> vector<8x1xf32>
    %31 = vector.broadcast %30 : vector<8x1xf32> to vector<8x16xf32>
    %32 = arith.mulf %29, %31 : vector<8x16xf32>
    %c0_13 = arith.constant 0 : index
    %c0_14 = arith.constant 0 : index
    %c0_15 = arith.constant 0 : index
    %33 = vector.load %arg4[%c0_13, %c0_14, %c0_15] : memref<1x8x32xf32, #tpu.memory_space<vmem>>, vector<1x8x16xf32>
    %34 = vector.shape_cast %33 : vector<1x8x16xf32> to vector<8x16xf32>
    %35 = vector.shape_cast %32 : vector<8x16xf32> to vector<1x8x16xf32>
    tpu.vector_store %arg4[%c0_13, %c0_14, %c0_15], %35 {strides = array<i32>} : memref<1x8x32xf32, #tpu.memory_space<vmem>>, vector<1x8x16xf32>,
    %36 = vector.extract_strided_slice %6 {offsets = [0, 16], sizes = [8, 16], strides = [1, 1]} : vector<8x96xf32> to vector<8x16xf32>
    %37 = vector.extract_strided_slice %6 {offsets = [0, 48], sizes = [8, 16], strides = [1, 1]} : vector<8x96xf32> to vector<8x16xf32>
    %38 = vector.extract_strided_slice %6 {offsets = [0, 80], sizes = [8, 16], strides = [1, 1]} : vector<8x96xf32> to vector<8x16xf32>
    %cst_16 = arith.constant 0xFF800000 : f32
    %39 = vector.broadcast %cst_16 : f32 to vector<8x1xf32>
    %cst_17 = arith.constant 0.000000e+00 : f32
    %40 = vector.broadcast %cst_17 : f32 to vector<8x1xf32>
    %cst_18 = arith.constant 0.000000e+00 : f32
    %41 = vector.broadcast %cst_18 : f32 to vector<8x16xf32>
    %cst_19 = arith.constant dense<0.000000e+00> : vector<8x8xf32>
    %42 = tpu.matmul %36, %37, %cst_19 {dimension_numbers = #tpu.dot_dimension_numbers<[1], [1], [0], [0], [0, 0, 1, 0], [], []>} : vector<8x16xf32>, vector<8x16xf32>, vector<8x8xf32> -> vector<8x8xf32>
    %cst_20 = arith.constant dense<0xFF800000> : vector<8xf32>
    %43 = vector.multi_reduction <maximumf>, %42, %cst_20 [1] : vector<8x8xf32> to vector<8xf32>
    %44 = vector.shape_cast %43 : vector<8xf32> to vector<8x1xf32>
    %45 = arith.maximumf %39, %44 : vector<8x1xf32>
    %46 = arith.subf %39, %45 : vector<8x1xf32>
    %47 = math.exp %46 : vector<8x1xf32>
    %48 = vector.broadcast %45 : vector<8x1xf32> to vector<8x8xf32>
    %49 = arith.subf %42, %48 : vector<8x8xf32>
    %50 = math.exp %49 : vector<8x8xf32>
    %51 = arith.mulf %47, %40 : vector<8x1xf32>
    %cst_21 = arith.constant dense<0.000000e+00> : vector<8xf32>
    %52 = vector.multi_reduction <add>, %50, %cst_21 [1] : vector<8x8xf32> to vector<8xf32>
    %53 = vector.shape_cast %52 : vector<8xf32> to vector<8x1xf32>
    %54 = arith.addf %51, %53 : vector<8x1xf32>
    %55 = vector.broadcast %47 : vector<8x1xf32> to vector<8x16xf32>
    %56 = arith.mulf %55, %41 : vector<8x16xf32>
    %cst_22 = arith.constant dense<0.000000e+00> : vector<8x16xf32>
    %57 = tpu.matmul %50, %38, %cst_22 {dimension_numbers = #tpu.dot_dimension_numbers<[1], [0], [0], [1], [0, 0, 1, 1], [], []>} : vector<8x8xf32>, vector<8x16xf32>, vector<8x16xf32> -> vector<8x16xf32>
    %58 = arith.addf %56, %57 : vector<8x16xf32>
    %59 = tpu.reciprocal %54 {approx = true} : vector<8x1xf32> -> vector<8x1xf32>
    %60 = vector.broadcast %59 : vector<8x1xf32> to vector<8x16xf32>
    %61 = arith.mulf %58, %60 : vector<8x16xf32>
    %c0_23 = arith.constant 0 : index
    %c0_24 = arith.constant 0 : index
    %c16 = arith.constant 16 : index
    %62 = vector.load %arg4[%c0_23, %c0_24, %c16] : memref<1x8x32xf32, #tpu.memory_space<vmem>>, vector<1x8x16xf32>
    %63 = vector.shape_cast %62 : vector<1x8x16xf32> to vector<8x16xf32>
    %64 = vector.shape_cast %61 : vector<8x16xf32> to vector<1x8x16xf32>
    tpu.vector_store %arg4[%c0_23, %c0_24, %c16], %64 {strides = array<i32>} : memref<1x8x32xf32, #tpu.memory_space<vmem>>, vector<1x8x16xf32>,
    return
  }
  func.func @transform_0(%arg0: i32) -> (i32, i32, i32) {
    %c0_i32 = arith.constant 0 : i32
    %c0_i32_0 = arith.constant 0 : i32
    %c0_i32_1 = arith.constant 0 : i32
    return %arg0, %c0_i32, %c0_i32_0 : i32, i32, i32
  }
  func.func @transform_1(%arg0: i32) -> (i32, i32) {
    %c0_i32 = arith.constant 0 : i32
    %c0_i32_0 = arith.constant 0 : i32
    %c0_i32_1 = arith.constant 0 : i32
    return %c0_i32, %c0_i32_0 : i32, i32
  }
  func.func @transform_2(%arg0: i32) -> (i32, i32) {
    %c0_i32 = arith.constant 0 : i32
    %c0_i32_0 = arith.constant 0 : i32
    %c0_i32_1 = arith.constant 0 : i32
    return %c0_i32, %c0_i32_0 : i32, i32
  }
  func.func @transform_3(%arg0: i32) -> (i32, i32, i32) {
    %c0_i32 = arith.constant 0 : i32
    %c0_i32_0 = arith.constant 0 : i32
    %c0_i32_1 = arith.constant 0 : i32
    return %arg0, %c0_i32, %c0_i32_0 : i32, i32, i32
  }
}

</mosaic_0001>

<llo_original>
// kernel: tpu_custom_call.1
$region0: #{tpu_custom_call.1}
  #allocation0 [shape = 'u32[]', space=smem, size = 0x4, offset = 0x4, fixed_abs, tag = 'smem constant byte address 0x4 - core index']
  #allocation1 [shape = 'u32[72,128]{1,0:T(1,128)}', space=vmem, size = 0x9000, scoped, tag = 'internal scratch']
  %s0 = inlined_call_operand.hbm [shape: f32[2,8,32], index: 0, kind: input, shape index: {}]
  %s1 = inlined_call_operand.hbm [shape: f32[32,96], index: 1, kind: input, shape index: {}]
  %s2 = inlined_call_operand.vmem [shape: f32[1,96], index: 2, kind: input, shape index: {}]
  %s3 = inlined_call_operand.hbm [shape: f32[2,8,32], index: 3, kind: output, shape index: {}]
  %s4 = sld [smem:[#allocation0]]
  $region53: #{tpu_custom_call.1} parent=0
    _
  %s6 = ssub.s32 1, %s4
  %s7 = scalar_select 0, %s6, %s4
  $region1: #{tpu_custom_call.1} parent=0
    #allocation2 [shape = 'u8[8192]{0}', space=vmem, size = 0x2000, scoped, tag = 'input window, operand 0']
    #allocation3 [shape = 's32[2]{0}', space=sflag, size = 0x8, scoped, tag = 'scoped memory for tpu_custom_call.1']
    #allocation4 [shape = 's32[2]{0}', space=sflag, size = 0x8, scoped, tag = 'scoped memory for tpu_custom_call.1']
    #allocation5 [shape = 'u8[16384]{0}', space=vmem, size = 0x4000, scoped, tag = 'input window, operand 1, single buffered']
    #allocation6 [shape = 's32[1]{0}', space=sflag, size = 0x4, scoped, tag = 'scoped memory for tpu_custom_call.1']
    #allocation7 [shape = 'u8[8192]{0}', space=vmem, size = 0x2000, scoped, tag = 'output window, operand 0']
    %8 = vsyncpa [#allocation3], 0
    %s9 = scalar_lea.sflag [#allocation3], 1
    %10 = vsyncpa %s9, 0
    %11 = vsyncpa [#allocation6], 0
    %12 = vsyncpa [#allocation4], 0
    %s13 = scalar_lea.sflag [#allocation4], 1
    %14 = vsyncpa %s13, 0
    loop: start=0, step=1, limit=4
    $region2: #{tpu_custom_call.1} parent=1 // loop_pre_header
      _
    $region3: #{tpu_custom_call.1} parent=1 // loop_header
      %s16 = sphi 0, %s20
      %p17 = scmp.ge.s32.totalorder %s16, 4
      %s26 = sphi 0, %s28
      %s29 = sphi 0, %s26
      %s30 = sphi 0, %s29
      %s46 = sphi 0, %s30
      %s50 = sphi 0, %s50
      %s52 = sphi 0, %s50
      %s53 = sphi 0, %s52
      %s67 = sphi 0, %s53
      %s71 = sphi 0, %s71
      %s73 = sphi 0, %s71
      %s74 = sphi 0, %s73
      %s88 = sphi 0, %s74
      %s94 = sphi 0, %s96
      %s97 = sphi 0, %s94
      %s98 = sphi 0, %s97
      %s114 = sphi 0, %s98
    $region4: #{tpu_custom_call.1} parent=1 // loop_header_branch
      %19 = sbr.rel (%p17) target = $region8
    $region5: #{tpu_custom_call.1} parent=1 // loop_body
      %s21 = ssub.s32 %s16, 1
      %s22 = ssub.s32 %s16, 2
      %s23 = sadd.s32 %s16, 1
      %s24 = ssub.s32 %s16, %s23
      %p25 = scmp.eq.s32.totalorder %s24, 0
      %s27 = sadd.s32 %s26, 1
      %s28 = scalar_select %p25, %s26, %s27
      %p31 = pneg %p25
      %p32 = scmp.eq.s32.totalorder %s16, 1
      %p33 = por %p31, %p32
      %p34 = scmp.ne.s32.totalorder %s26, %s29
      %p35 = scmp.eq.s32.totalorder %s16, 0
      %p36 = por %p34, %p35
      %p37 = scmp.ne.s32.totalorder %s26, %s29
      %p38 = scmp.eq.s32.totalorder %s21, 1
      %p39 = por %p37, %p38
      %p40 = scmp.ne.s32.totalorder %s29, %s30
      %p41 = scmp.eq.s32.totalorder %s21, 0
      %p42 = por %p40, %p41
      %p43 = scmp.ne.s32.totalorder %s29, %s30
      %p44 = scmp.eq.s32.totalorder %s22, 1
      %p45 = por %p43, %p44
      %p47 = scmp.ne.s32.totalorder %s30, %s46
      %p48 = scmp.eq.s32.totalorder %s22, 0
      %p49 = por %p47, %p48
      %s51 = sadd.s32 %s50, 1
      %p54 = scmp.eq.s32.totalorder %s16, 1
      %p55 = scmp.ne.s32.totalorder %s50, %s52
      %p56 = scmp.eq.s32.totalorder %s16, 0
      %p57 = por %p55, %p56
      %p58 = scmp.ne.s32.totalorder %s50, %s52
      %p59 = scmp.eq.s32.totalorder %s21, 1
      %p60 = por %p58, %p59
      %p61 = scmp.ne.s32.totalorder %s52, %s53
      %p62 = scmp.eq.s32.totalorder %s21, 0
      %p63 = por %p61, %p62
      %p64 = scmp.ne.s32.totalorder %s52, %s53
      %p65 = scmp.eq.s32.totalorder %s22, 1
      %p66 = por %p64, %p65
      %p68 = scmp.ne.s32.totalorder %s53, %s67
      %p69 = scmp.eq.s32.totalorder %s22, 0
      %p70 = por %p68, %p69
      %s72 = sadd.s32 %s71, 1
      %p75 = scmp.eq.s32.totalorder %s16, 1
      %p76 = scmp.ne.s32.totalorder %s71, %s73
      %p77 = scmp.eq.s32.totalorder %s16, 0
      %p78 = por %p76, %p77
      %p79 = scmp.ne.s32.totalorder %s71, %s73
      %p80 = scmp.eq.s32.totalorder %s21, 1
      %p81 = por %p79, %p80
      %p82 = scmp.ne.s32.totalorder %s73, %s74
      %p83 = scmp.eq.s32.totalorder %s21, 0
      %p84 = por %p82, %p83
      %p85 = scmp.ne.s32.totalorder %s73, %s74
      %p86 = scmp.eq.s32.totalorder %s22, 1
      %p87 = por %p85, %p86
      %p89 = scmp.ne.s32.totalorder %s74, %s88
      %p90 = scmp.eq.s32.totalorder %s22, 0
      %p91 = por %p89, %p90
      %s92 = ssub.s32 %s16, %s23
      %p93 = scmp.eq.s32.totalorder %s92, 0
      %s95 = sadd.s32 %s94, 1
      %s96 = scalar_select %p93, %s94, %s95
      %p99 = pneg %p93
      %p100 = scmp.eq.s32.totalorder %s16, 1
      %p101 = por %p99, %p100
      %p102 = scmp.ne.s32.totalorder %s94, %s97
      %p103 = scmp.eq.s32.totalorder %s16, 0
      %p104 = por %p102, %p103
      %p105 = scmp.ne.s32.totalorder %s94, %s97
      %p106 = scmp.eq.s32.totalorder %s21, 1
      %p107 = por %p105, %p106
      %p108 = scmp.ne.s32.totalorder %s97, %s98
      %p109 = scmp.eq.s32.totalorder %s21, 0
      %p110 = por %p108, %p109
      %p111 = scmp.ne.s32.totalorder %s97, %s98
      %p112 = scmp.eq.s32.totalorder %s22, 1
      %p113 = por %p111, %p112
      %p115 = scmp.ne.s32.totalorder %s98, %s114
      %p116 = scmp.eq.s32.totalorder %s22, 0
      %p117 = por %p115, %p116
      %p118 = scmp.le.s32.totalorder 1, %s16
      %p119 = scmp.lt.s32.totalorder %s16, 3
      %p120 = pnand %p118, %p119
      %p121 = pneg %p120
      // Predicated region
      $region9: #{tpu_custom_call.1} parent=5 // pred_check
        _
      $region10: #{tpu_custom_call.1} parent=5 // pred_check_branch
        %123 = sbr.rel (%p120) target = $region12
      $region11: #{tpu_custom_call.1} parent=5 // pred_region
        %s124 = ssub.s32 %s16, 1
        // Predicated region
        $region13: #{tpu_custom_call.1} parent=11 // pred_check
          %p125 = pneg %p63
        $region14: #{tpu_custom_call.1} parent=11 // pred_check_branch
          %127 = sbr.rel (%p125) target = $region16
        $region15: #{tpu_custom_call.1} parent=11 // pred_region
          %129 = vsyncadd [#allocation6], 0
          %s130 = sshll.u32 %s1, 4
          %s131 = int_to_ptr.hbm [resolvable:$true] %s130
          %s132 = sshll.u32 [#allocation5], 4
          %s133 = int_to_ptr.vmem [resolvable:$true] %s132
          %138 = dma.hbm_to_vmem [thread:$0]  %s131, 512, %s133, [#allocation6], 128, 128, 8
        $region16: #{tpu_custom_call.1} parent=11 // pred_fallthru
          _
        // Predicated region
        $region17: #{tpu_custom_call.1} parent=11 // pred_check
          %p139 = pneg %p84
        $region18: #{tpu_custom_call.1} parent=11 // pred_check_branch
          %141 = sbr.rel (%p139) target = $region20
        $region19: #{tpu_custom_call.1} parent=11 // pred_region
          _
        $region20: #{tpu_custom_call.1} parent=11 // pred_fallthru
          _
      $region12: #{tpu_custom_call.1} parent=5 // pred_fallthru
        _
      %p142 = scmp.lt.s32.totalorder %s16, 2
      // Predicated region
      $region21: #{tpu_custom_call.1} parent=5 // pred_check
        %p143 = pneg %p142
      $region22: #{tpu_custom_call.1} parent=5 // pred_check_branch
        %145 = sbr.rel (%p143) target = $region24
      $region23: #{tpu_custom_call.1} parent=5 // pred_region
        // Predicated region
        $region25: #{tpu_custom_call.1} parent=23 // pred_check
          %p146 = pneg %p36
        $region26: #{tpu_custom_call.1} parent=23 // pred_check_branch
          %148 = sbr.rel (%p146) target = $region28
        $region27: #{tpu_custom_call.1} parent=23 // pred_region
          %s149 = sand.u32 %s26, 1
          %s150 = scalar_lea.sflag [#allocation3], %s149
          %s151 = sand.u32 %s26, 1
          %s152 = smul.addr %s151, 8
          %s153 = scalar_lea.vmem [#allocation2], %s152
          %155 = vsyncadd %s150, 0
          %s156 = smul.addr %s16, 8
          %s157 = scalar_lea.hbm %s0, %s156
          %s159 = sshll.u32 %s157, 4
          %s160 = int_to_ptr.hbm [resolvable:$true] %s159
          %s161 = sshll.u32 %s153, 4
          %s162 = int_to_ptr.vmem [resolvable:$true] %s161
          %164 = dma.hbm_to_vmem [thread:$0]  %s160, 128, %s162, %s150
        $region28: #{tpu_custom_call.1} parent=23 // pred_fallthru
          _
      $region24: #{tpu_custom_call.1} parent=5 // pred_fallthru
        _
      %p165 = scmp.le.s32.totalorder 1, %s16
      %p166 = scmp.lt.s32.totalorder %s16, 3
      %p167 = pnand %p165, %p166
      %p168 = pneg %p167
      // Predicated region
      $region29: #{tpu_custom_call.1} parent=5 // pred_check
        _
      $region30: #{tpu_custom_call.1} parent=5 // pred_check_branch
        %170 = sbr.rel (%p167) target = $region32
      $region31: #{tpu_custom_call.1} parent=5 // pred_region
        %s171 = ssub.s32 %s16, 1
        %s172 = sand.u32 %s29, 1
        %s173 = scalar_lea.sflag [#allocation3], %s172
        %s174 = sand.u32 %s29, 1
        %s175 = smul.addr %s174, 8
        %s176 = scalar_lea.vmem [#allocation2], %s175
        // Predicated region
        $region33: #{tpu_custom_call.1} parent=31 // pred_check
          %p177 = pneg %p42
        $region34: #{tpu_custom_call.1} parent=31 // pred_check_branch
          %179 = sbr.rel (%p177) target = $region36
        $region35: #{tpu_custom_call.1} parent=31 // pred_region
          %181 = dma.done %s173, 128
        $region36: #{tpu_custom_call.1} parent=31 // pred_fallthru
          _
        // Predicated region
        $region37: #{tpu_custom_call.1} parent=31 // pred_check
          %p182 = pneg %p63
        $region38: #{tpu_custom_call.1} parent=31 // pred_check_branch
          %184 = sbr.rel (%p182) target = $region40
        $region39: #{tpu_custom_call.1} parent=31 // pred_region
          %186 = dma.done [#allocation6], 512
        $region40: #{tpu_custom_call.1} parent=31 // pred_fallthru
          _
        %s187 = sand.u32 %s29, 1
        %s188 = scalar_lea.sflag [#allocation3], %s187
        %s189 = sand.u32 %s29, 1
        %s190 = smul.addr %s189, 8
        %s191 = scalar_lea.vmem [#allocation2], %s190
        %p192 = pneg %p42
        %p193 = pneg %p39
        %p194 = pneg %p63
        %p195 = pneg %p60
        %p196 = pneg %p84
        %p197 = pneg %p81
        %p198 = pneg %p110
        %p199 = pneg %p107
        %s200 = sand.u32 %s97, 1
        %s201 = scalar_lea.sflag [#allocation4], %s200
        %s202 = sand.u32 %s97, 1
        %s203 = smul.addr %s202, 8
        %s204 = scalar_lea.vmem [#allocation7], %s203
        %v205 = vld [vmem:[%s176] sm:$0xff]
        %v206 = vld [vmem:[#allocation5] sm:$0xff]
        %v207 = vld [vmem:[#allocation5 + $0x8] sm:$0xff]
        %v208 = vld [vmem:[#allocation5 + $0x10] sm:$0xff]
        %v209 = vld [vmem:[#allocation5 + $0x18] sm:$0xff]
        %v210 = vld [vmem:[%s2] sm:$0x1]
        %v212 = vperm.slane %v210, 0
        %vm214 = vcmask 261120
        %v216 = vsel %vm214, %v205, 0
        %218 = vmatpush.msra.mxu0 0.0
        %219 = vmatpush.msra.mxu0 0.0
        %220 = vmatpush.msra.mxu0 0.0
        %221 = vmatpush.msra.mxu0 0.0
        %222 = vmatpush.msra.mxu0 0.0
        %223 = vmatpush.msra.mxu0 0.0
        %224 = vmatpush.msra.mxu0 0.0
        %225 = vmatpush.msra.mxu0 0.0
        %226 = vmatpush.msra.mxu0 0.0
        %227 = vmatpush.msra.mxu0 0.0
        %228 = vmatpush.msra.mxu0 0.0
        %229 = vmatpush.msra.mxu0 0.0
        %230 = vmatpush.msra.mxu0 %v209
        %231 = vmatpush.msra.mxu0 %v208
        %232 = vmatpush.msra.mxu0 %v207
        %233 = vmatpush.msra.mxu0 %v206
        %234 = vmatmul.f32.gmra.mxu0 %v216
        %v235 = vpop.f32.mrf.mxu0
        %v236 = vadd.f32 %v212, %v235
        %237 = vdwg.mxu0
        %239 = vrot.lane.b32.xlu0 %v236, 96
        %v240 = vpop.permute.xlu0 %239
        %vm241 = vcmask 130048
        %v242 = vsel %vm241, %v236, 0
        %v244 = vsel %vm241, %v240, 0
        %246 = vmatpush.xpose.msra.mxu0 0.0
        %247 = vmatpush.xpose.msra.mxu0 0.0
        %248 = vmatpush.xpose.msra.mxu0 0.0
        %249 = vmatpush.xpose.msra.mxu0 0.0
        %250 = vmatpush.xpose.msra.mxu0 0.0
        %251 = vmatpush.xpose.msra.mxu0 0.0
        %252 = vmatpush.xpose.msra.mxu0 0.0
        %253 = vmatpush.xpose.msra.mxu0 0.0
        %254 = vmatpush.xpose.msra.mxu0 0.0
        %255 = vmatpush.xpose.msra.mxu0 0.0
        %256 = vmatpush.xpose.msra.mxu0 0.0
        %257 = vmatpush.xpose.msra.mxu0 0.0
        %258 = vmatpush.xpose.msra.mxu0 0.0
        %259 = vmatpush.xpose.msra.mxu0 0.0
        %260 = vmatpush.xpose.msra.mxu0 0.0
        %261 = vmatpush.xpose.msra.mxu0 %v244
        %262 = vmatmul.f32.gmra.mxu0 %v242
        %v263 = vpop.f32.mrf.mxu0
        %v264 = vadd.f32 0.0, %v263
        %265 = vdwg.mxu0
        %vm266 = vcmask 64512
        %v267 = vsel %vm266, %v264, -inf
        %268 = vmax.xlane.f32.xlu0 %v267
        %v269 = vpop.xlane.xlu0 %268
        %v270 = vsub.f32 -inf, %v269
        %v271 = vmul.f32 %v270, 1.442695
        %v272 = vpow.pop %v271
        %v273 = vsub.f32 %v264, %v269
        %v274 = vmul.f32 %v273, 1.442695
        %v275 = vpow.pop %v274
        %v276 = vmul.f32 %v272, 0.0
        %v277 = vsel %vm266, %v275, 0.0
        %278 = vadd.xlane.f32.xlu0 %v277
        %v279 = vpop.xlane.xlu0 %278
        %v280 = vadd.f32 %v276, %v279
        %281 = vrot.lane.b32.xlu0 %v236, 64
        %v282 = vpop.permute.xlu0 %281
        %v285 = vsel %vm266, %v275, 0
        %287 = vmatpush.msra.mxu0 0.0
        %288 = vmatpush.msra.mxu0 0.0
        %289 = vmatpush.msra.mxu0 0.0
        %290 = vmatpush.msra.mxu0 0.0
        %291 = vmatpush.msra.mxu0 0.0
        %292 = vmatpush.msra.mxu0 0.0
        %293 = vmatpush.msra.mxu0 0.0
        %294 = vmatpush.msra.mxu0 0.0
        %295 = vmatpush.msra.mxu0 0.0
        %296 = vmatpush.msra.mxu0 0.0
        %297 = vmatpush.msra.mxu0 0.0
        %298 = vmatpush.msra.mxu0 0.0
        %299 = vmatpush.msra.mxu0 0.0
        %300 = vmatpush.msra.mxu0 0.0
        %301 = vmatpush.msra.mxu0 0.0
        %302 = vmatpush.msra.mxu0 %v282
        %303 = vmatmul.f32.gmra.mxu0 %v285
        %v304 = vpop.f32.mrf.mxu0
        %v305 = vadd.f32 0.0, %v304
        %306 = vdwg.mxu0
        %v307 = vadd.f32 %v276, %v305
        %v308 = vrcp.pop %v280
        %v309 = vmul.f32 %v307, %v308
        %310 = vst.msk [vmem:[%s204] sm:$0xff] %vm241, %v309
        %311 = vrot.lane.b32.xlu0 %v236, 112
        %v312 = vpop.permute.xlu0 %311
        %313 = vrot.lane.b32.xlu0 %v236, 80
        %v314 = vpop.permute.xlu0 %313
        %v315 = vsel %vm241, %v312, 0
        %v317 = vsel %vm241, %v314, 0
        %319 = vmatpush.xpose.msra.mxu0 0.0
        %320 = vmatpush.xpose.msra.mxu0 0.0
        %321 = vmatpush.xpose.msra.mxu0 0.0
        %322 = vmatpush.xpose.msra.mxu0 0.0
        %323 = vmatpush.xpose.msra.mxu0 0.0
        %324 = vmatpush.xpose.msra.mxu0 0.0
        %325 = vmatpush.xpose.msra.mxu0 0.0
        %326 = vmatpush.xpose.msra.mxu0 0.0
        %327 = vmatpush.xpose.msra.mxu0 0.0
        %328 = vmatpush.xpose.msra.mxu0 0.0
        %329 = vmatpush.xpose.msra.mxu0 0.0
        %330 = vmatpush.xpose.msra.mxu0 0.0
        %331 = vmatpush.xpose.msra.mxu0 0.0
        %332 = vmatpush.xpose.msra.mxu0 0.0
        %333 = vmatpush.xpose.msra.mxu0 0.0
        %334 = vmatpush.xpose.msra.mxu0 %v317
        %335 = vmatmul.f32.gmra.mxu0 %v315
        %v336 = vpop.f32.mrf.mxu0
        %v337 = vadd.f32 0.0, %v336
        %338 = vdwg.mxu0
        %v339 = vsel %vm266, %v337, -inf
        %340 = vmax.xlane.f32.xlu0 %v339
        %v341 = vpop.xlane.xlu0 %340
        %v342 = vsub.f32 -inf, %v341
        %v343 = vmul.f32 %v342, 1.442695
        %v344 = vpow.pop %v343
        %v345 = vsub.f32 %v337, %v341
        %v346 = vmul.f32 %v345, 1.442695
        %v347 = vpow.pop %v346
        %v348 = vmul.f32 %v344, 0.0
        %v349 = vsel %vm266, %v347, 0.0
        %350 = vadd.xlane.f32.xlu0 %v349
        %v351 = vpop.xlane.xlu0 %350
        %v352 = vadd.f32 %v348, %v351
        %353 = vrot.lane.b32.xlu0 %v236, 48
        %v354 = vpop.permute.xlu0 %353
        %v357 = vsel %vm266, %v347, 0
        %359 = vmatpush.msra.mxu0 0.0
        %360 = vmatpush.msra.mxu0 0.0
        %361 = vmatpush.msra.mxu0 0.0
        %362 = vmatpush.msra.mxu0 0.0
        %363 = vmatpush.msra.mxu0 0.0
        %364 = vmatpush.msra.mxu0 0.0
        %365 = vmatpush.msra.mxu0 0.0
        %366 = vmatpush.msra.mxu0 0.0
        %367 = vmatpush.msra.mxu0 0.0
        %368 = vmatpush.msra.mxu0 0.0
        %369 = vmatpush.msra.mxu0 0.0
        %370 = vmatpush.msra.mxu0 0.0
        %371 = vmatpush.msra.mxu0 0.0
        %372 = vmatpush.msra.mxu0 0.0
        %373 = vmatpush.msra.mxu0 0.0
        %374 = vmatpush.msra.mxu0 %v354
        %375 = vmatmul.f32.gmra.mxu0 %v357
        %v376 = vpop.f32.mrf.mxu0
        %v377 = vadd.f32 0.0, %v376
        %378 = vdwg.mxu0
        %v379 = vadd.f32 %v348, %v377
        %v380 = vrcp.pop %v352
        %v381 = vmul.f32 %v379, %v380
        %383 = vrot.lane.b32.xlu0 %v381, 16
        %v384 = vpop.permute.xlu0 %383
        %vm386 = vcmask 261248
        %387 = vst.msk [vmem:[%s204] sm:$0xff] %vm386, %v384
        %s388 = sand.u32 %s97, 1
        %s389 = scalar_lea.sflag [#allocation4], %s388
        %s390 = sand.u32 %s97, 1
        %s391 = smul.addr %s390, 8
        %s392 = scalar_lea.vmem [#allocation7], %s391
        // Predicated region
        $region41: #{tpu_custom_call.1} parent=31 // pred_check
          %p393 = pneg %p107
        $region42: #{tpu_custom_call.1} parent=31 // pred_check_branch
          %395 = sbr.rel (%p393) target = $region44
        $region43: #{tpu_custom_call.1} parent=31 // pred_region
          %397 = vsyncadd %s389, 0
          %s398 = smul.addr %s21, 8
          %s399 = scalar_lea.hbm %s3, %s398
          %s401 = sshll.u32 %s392, 4
          %s402 = int_to_ptr.vmem [resolvable:$true] %s401
          %s403 = sshll.u32 %s399, 4
          %s404 = int_to_ptr.hbm [resolvable:$true] %s403
          %406 = dma.vmem_to_hbm [thread:$0]  %s402, 128, %s404, %s389
        $region44: #{tpu_custom_call.1} parent=31 // pred_fallthru
          _
      $region32: #{tpu_custom_call.1} parent=5 // pred_fallthru
        _
      %p407 = scmp.le.s32.totalorder 2, %s16
      // Predicated region
      $region45: #{tpu_custom_call.1} parent=5 // pred_check
        %p408 = pneg %p407
      $region46: #{tpu_custom_call.1} parent=5 // pred_check_branch
        %410 = sbr.rel (%p408) target = $region48
      $region47: #{tpu_custom_call.1} parent=5 // pred_region
        %s411 = ssub.s32 %s16, 2
        // Predicated region
        $region49: #{tpu_custom_call.1} parent=47 // pred_check
          %p412 = pneg %p113
        $region50: #{tpu_custom_call.1} parent=47 // pred_check_branch
          %414 = sbr.rel (%p412) target = $region52
        $region51: #{tpu_custom_call.1} parent=47 // pred_region
          %s415 = sand.u32 %s98, 1
          %s416 = scalar_lea.sflag [#allocation4], %s415
          %s417 = sand.u32 %s98, 1
          %s418 = smul.addr %s417, 8
          %s419 = scalar_lea.vmem [#allocation7], %s418
          %421 = dma.done %s416, 128
        $region52: #{tpu_custom_call.1} parent=47 // pred_fallthru
          _
      $region48: #{tpu_custom_call.1} parent=5 // pred_fallthru
        _
    $region6: #{tpu_custom_call.1} parent=1 // loop_footer
      %s20 = sadd.s32 1, %s16
    $region7: #{tpu_custom_call.1} parent=1 // loop_footer_branch
      %15 = sbr.rel target = $region3
    $region8: #{tpu_custom_call.1} parent=1 // loop_exit
      _
    %422 = vsyncpa [#allocation3], 1
    %s423 = scalar_lea.sflag [#allocation3], 1
    %424 = vsyncpa %s423, 1
    %425 = vsyncpa [#allocation6], 1
    %426 = vsyncpa [#allocation4], 1
    %s427 = scalar_lea.sflag [#allocation4], 1
    %428 = vsyncpa %s427, 1

</llo_original>
